<compile_context>
chip_gen: v7x
topology: tpu7x:2x2x1
jax: 0.10.0
libtpu: 0.0.40
codegen_flags: <defaults>
</compile_context>

<pallas_src>
import functools

import jax
import jax.numpy as jnp
from jax.experimental import pallas as pl
from jax.experimental.pallas import tpu as pltpu

# Abramowitz & Stegun 7.1.26 erf coefficients (|err| <= 1.5e-7).
_A1, _A2, _A3, _A4, _A5 = (0.254829592, -0.284496736, 1.421413741,
                           -1.453152027, 1.061405429)
_P = 0.3275911
_INV_SQRT2 = 0.7071067811865476


def _gelu_exact(x):
    """0.5 * x * (1 + erf(x/sqrt(2))) == torch.nn.GELU() default (exact erf).

    VALU/EUP-lean version: approx reciprocal (+1 Newton step) instead of the
    exact f32 divide, and sign restore via a bit-OR instead of sign/select.
    """
    y = x * _INV_SQRT2
    ay = jnp.abs(y)
    d = _P * ay + 1.0
    t = pl.reciprocal(d, approx=True)
    t = t * (2.0 - d * t)                      # 1 Newton step -> ~1e-7 rel err
    poly = ((((_A5 * t + _A4) * t + _A3) * t + _A2) * t + _A1) * t
    e = jnp.exp(-(ay * ay))
    erf_abs = 1.0 - poly * e                   # erf(|y|)
    # copysign(erf_abs, y) via bit ops.
    sign_bits = pltpu.bitcast(y, jnp.uint32) & jnp.uint32(0x80000000)
    erf = pltpu.bitcast(pltpu.bitcast(erf_abs, jnp.uint32) | sign_bits,
                        jnp.float32)
    half_x = 0.5 * x
    return half_x * erf + half_x


def cbf_fwd_kernel(xu_ref, w1_ref, b1_ref, w2_ref, b2_ref, w3_ref, b3_ref,
                   out_ref, *, x_dim, u_dim):
    """Feature-major: xu_ref [x_dim+u_dim, TILE_N], out_ref [x_dim, TILE_N].

    w3/b3 arrive row-permuted so that h rows are
        [0:x_dim]                       -> fx
        [x_dim + m*u_dim : +u_dim]      -> coefficient of u_m for every output j
    """
    xu = xu_ref[...]
    x = xu[:x_dim, :]                     # [x_dim, TILE_N]
    u = xu[x_dim:, :]                     # [u_dim, TILE_N]

    # ---- MLP: Linear -> GELU -> Linear -> GELU -> Linear (W @ H on the MXU) --
    h = jnp.dot(w1_ref[...], x, preferred_element_type=jnp.float32) + b1_ref[...]
    h = _gelu_exact(h)
    h = jnp.dot(w2_ref[...], h, preferred_element_type=jnp.float32) + b2_ref[...]
    h = _gelu_exact(h)
    h = jnp.dot(w3_ref[...], h, preferred_element_type=jnp.float32) + b3_ref[...]
    # h: [x_dim * (1 + u_dim), TILE_N], rows grouped as documented above.

    # ---- CBF combination: 3 full-block [x_dim, TILE_N] FMAs, direct store ----
    acc = h[:x_dim, :]                    # fx
    for m in range(x_dim):                # static unroll over control dims
        lo = x_dim + m * u_dim
        acc = acc + h[lo:lo + u_dim, :] * u[m:m + 1, :]   # sublane-broadcast u_m
    out_ref[...] = acc


def _round_up(a, m):
    return ((a + m - 1) // m) * m


def _choose_tile_n(n, max_tile=8192, min_steps=2):
    """Biggest lane tile that (a) fits comfortably in every gen's scoped VMEM
    and (b) still yields >= min_steps grid steps for v7x's 2 TensorCores."""
    n128 = _round_up(max(n, 1), 128)
    if n128 <= min_steps * 128:
        return n128                               # too small to split usefully
    per_step = _round_up(-(-n // min_steps), 128)  # ceil(n/min_steps), lane-aligned
    return min(max_tile, per_step)


@functools.partial(jax.jit, static_argnames=("x_dim", "u_dim"))
def cbf_forward(x, u, params, *, x_dim, u_dim):
    """x: [B, T, x_dim], u: [B, T, u_dim] (u_dim == x_dim in this module)."""
    assert x_dim == u_dim, "training-branch add requires u_dim == x_dim"
    B, T, _ = x.shape
    N = B * T

    xf = x.reshape(N, x_dim).astype(jnp.float32)
    uf = jnp.broadcast_to(u, (B, T, u_dim)).reshape(N, u_dim).astype(jnp.float32)

    tile_n = _choose_tile_n(N)
    n_pad = _round_up(N, tile_n)

    # Single feature-major input slab [x_dim + u_dim, N_pad] (x rows then u rows).
    xu = jnp.concatenate([xf, uf], axis=1).T
    xu = jnp.pad(xu, ((0, 0), (0, n_pad - N)))

    (w1, b1), (w2, b2), (w3, b3) = params            # weights stay [out, in]

    # Permute the last layer's output rows so the kernel epilogue can work on
    # full [x_dim, TILE_N] blocks: new row x_dim + m*u_dim + j holds old row
    # x_dim + j*x_dim + m  (coefficient of u_m for output j).
    perm = list(range(x_dim)) + [x_dim + j * x_dim + m
                                 for m in range(x_dim) for j in range(u_dim)]
    perm = jnp.asarray(perm, dtype=jnp.int32)
    w3p = w3[perm, :]
    b3p = b3[perm]

    b1c, b2c, b3c = b1[:, None], b2[:, None], b3p[:, None]   # [out, 1] columns

    feat_in = x_dim + u_dim
    const = lambda i: (0, 0)                          # weights resident in VMEM

    out_fm = pl.pallas_call(
        functools.partial(cbf_fwd_kernel, x_dim=x_dim, u_dim=u_dim),
        out_shape=jax.ShapeDtypeStruct((x_dim, n_pad), jnp.float32),
        grid=(n_pad // tile_n,),
        in_specs=[
            pl.BlockSpec((feat_in, tile_n), lambda i: (0, i)),
            pl.BlockSpec(w1.shape, const),
            pl.BlockSpec(b1c.shape, const),
            pl.BlockSpec(w2.shape, const),
            pl.BlockSpec(b2c.shape, const),
            pl.BlockSpec(w3p.shape, const),
            pl.BlockSpec(b3c.shape, const),
        ],
        out_specs=pl.BlockSpec((x_dim, tile_n), lambda i: (0, i)),
        compiler_params=pltpu.CompilerParams(
            dimension_semantics=("parallel",),        # independent column tiles
            allow_input_fusion=[True, False, False, False, False, False, False],
        ),
    )(xu, w1, b1c, w2, b2c, w3p, b3c)

    # Consumers that accept feature-major [x_dim, N] could skip this transpose
    # (it is one extra HBM pass); kept here to match the PyTorch output layout.
    return out_fm[:, :N].T.reshape(B, T, x_dim)


def init_params(key, fc_param):
    """nn.init.normal_(weight, std=0.1), bias = 0 — deterministic via PRNGKey."""
    params = []
    for i in range(len(fc_param) - 1):
        key, sub = jax.random.split(key)
        w = 0.1 * jax.random.normal(sub, (fc_param[i + 1], fc_param[i]),
                                    dtype=jnp.float32)   # PyTorch [out, in]
        b = jnp.zeros((fc_param[i + 1],), dtype=jnp.float32)
        params.append((w, b))
    return params


def reference_forward(x, u, params, x_dim, u_dim):
    """Pure-JAX reference of the PyTorch training-mode forward."""
    h = x
    n_layers = len(params)
    for i, (w, b) in enumerate(params):
        h = h @ w.T + b
        if i != n_layers - 1:
            h = jax.nn.gelu(h, approximate=False)    # exact erf GELU
    fx = h[..., :x_dim]
    gx = h[..., x_dim:]
    chunks = jnp.split(gx, u_dim, axis=-1)
    out = jnp.concatenate([jnp.sum(g * u, axis=2, keepdims=True) for g in chunks],
                          axis=2) + fx
    return out


if __name__ == "__main__":
    # fc_param = [x_dim, hidden, hidden, x_dim + u_dim * x_dim], x_dim = 3,
    # u_dim = 3 (3-D robot state, 3-D action) -> last layer width 12.
    fc_param = [3, 32, 32, 12]
    x_dim = fc_param[0]
    u_dim = (fc_param[-1] - x_dim) // x_dim

    B, T = 2, 8
    key = jax.random.PRNGKey(0)
    key, kx, ku, kp = jax.random.split(key, 4)
    x = jax.random.normal(kx, (B, T, x_dim), dtype=jnp.float32)
    u = jax.random.normal(ku, (B, T, u_dim), dtype=jnp.float32)  # self.u
    params = init_params(kp, fc_param)

    out = cbf_forward(x, u, params, x_dim=x_dim, u_dim=u_dim)
    out = jax.block_until_ready(out)

    ref = reference_forward(x, u, params, x_dim, u_dim)
    assert out.shape == (B, T, x_dim)
    assert jnp.allclose(out, ref, atol=1e-4, rtol=1e-4), "mismatch vs reference"

    # TODO(synk): dCBF_* QP projections (cvxopt solver), constraint_valid and
    # build_discretized_center_line are host-side control logic (cvxopt/scipy,
    # data-dependent argmin on numpy) outside the forward pass; no Pallas
    # equivalent implemented.
    print("KERNEL_OK")
</pallas_src>

<mosaic_0001>
module attributes {stable_mosaic.version = 11 : i64} {
  func.func @cbf_fwd_kernel(%arg0: i32, %arg1: memref<6x128xf32, #tpu.memory_space<vmem>>, %arg2: memref<32x3xf32, #tpu.memory_space<vmem>>, %arg3: memref<32x1xf32, #tpu.memory_space<vmem>>, %arg4: memref<32x32xf32, #tpu.memory_space<vmem>>, %arg5: memref<32x1xf32, #tpu.memory_space<vmem>>, %arg6: memref<12x32xf32, #tpu.memory_space<vmem>>, %arg7: memref<12x1xf32, #tpu.memory_space<vmem>>, %arg8: memref<3x128xf32, #tpu.memory_space<vmem>>) attributes {dimension_semantics = [#tpu.dimension_semantics<parallel>], iteration_bounds = array<i64: 1>, scalar_prefetch = 0 : i64, scratch_operands = 0 : i64, tpu.core_type = #tpu.core_type<tc>, window_params = [{transform_indices = @transform_0, window_bounds = array<i64: 6, 128>}, {pipeline_mode = #tpu.pipeline_mode<synchronous>, transform_indices = @transform_1, window_bounds = array<i64: 32, 3>}, {pipeline_mode = #tpu.pipeline_mode<synchronous>, transform_indices = @transform_2, window_bounds = array<i64: 32, 1>}, {pipeline_mode = #tpu.pipeline_mode<synchronous>, transform_indices = @transform_3, window_bounds = array<i64: 32, 32>}, {pipeline_mode = #tpu.pipeline_mode<synchronous>, transform_indices = @transform_4, window_bounds = array<i64: 32, 1>}, {pipeline_mode = #tpu.pipeline_mode<synchronous>, transform_indices = @transform_5, window_bounds = array<i64: 12, 32>}, {pipeline_mode = #tpu.pipeline_mode<synchronous>, transform_indices = @transform_6, window_bounds = array<i64: 12, 1>}, {transform_indices = @transform_7, window_bounds = array<i64: 3, 128>}]} {
    %c0 = arith.constant 0 : index
    %c0_0 = arith.constant 0 : index
    %0 = vector.load %arg1[%c0, %c0_0] : memref<6x128xf32, #tpu.memory_space<vmem>>, vector<6x128xf32>
    %1 = vector.extract_strided_slice %0 {offsets = [0, 0], sizes = [3, 128], strides = [1, 1]} : vector<6x128xf32> to vector<3x128xf32>
    %2 = vector.extract_strided_slice %0 {offsets = [3, 0], sizes = [3, 128], strides = [1, 1]} : vector<6x128xf32> to vector<3x128xf32>
    %c0_1 = arith.constant 0 : index
    %c0_2 = arith.constant 0 : index
    %3 = vector.load %arg2[%c0_1, %c0_2] : memref<32x3xf32, #tpu.memory_space<vmem>>, vector<32x3xf32>
    %cst = arith.constant dense<0.000000e+00> : vector<32x128xf32>
    %4 = tpu.matmul %3, %1, %cst {dimension_numbers = #tpu.dot_dimension_numbers<[1], [0], [0], [1], [0, 0, 1, 1], [], []>} : vector<32x3xf32>, vector<3x128xf32>, vector<32x128xf32> -> vector<32x128xf32>
    %c0_3 = arith.constant 0 : index
    %c0_4 = arith.constant 0 : index
    %5 = vector.load %arg3[%c0_3, %c0_4] : memref<32x1xf32, #tpu.memory_space<vmem>>, vector<32x1xf32>
    %6 = vector.broadcast %5 : vector<32x1xf32> to vector<32x128xf32>
    %7 = arith.addf %4, %6 : vector<32x128xf32>
    %cst_5 = arith.constant 0.707106769 : f32
    %8 = vector.broadcast %cst_5 : f32 to vector<32x128xf32>
    %9 = arith.mulf %7, %8 : vector<32x128xf32>
    %10 = math.absf %9 : vector<32x128xf32>
    %cst_6 = arith.constant 0.327591091 : f32
    %11 = vector.broadcast %cst_6 : f32 to vector<32x128xf32>
    %12 = arith.mulf %11, %10 : vector<32x128xf32>
    %cst_7 = arith.constant 1.000000e+00 : f32
    %13 = vector.broadcast %cst_7 : f32 to vector<32x128xf32>
    %14 = arith.addf %12, %13 : vector<32x128xf32>
    %15 = tpu.reciprocal %14 {approx = true} : vector<32x128xf32> -> vector<32x128xf32>
    %16 = arith.mulf %14, %15 : vector<32x128xf32>
    %cst_8 = arith.constant 2.000000e+00 : f32
    %17 = vector.broadcast %cst_8 : f32 to vector<32x128xf32>
    %18 = arith.subf %17, %16 : vector<32x128xf32>
    %19 = arith.mulf %15, %18 : vector<32x128xf32>
    %cst_9 = arith.constant 1.06140542 : f32
    %20 = vector.broadcast %cst_9 : f32 to vector<32x128xf32>
    %21 = arith.mulf %20, %19 : vector<32x128xf32>
    %cst_10 = arith.constant -1.45315206 : f32
    %22 = vector.broadcast %cst_10 : f32 to vector<32x128xf32>
    %23 = arith.addf %21, %22 : vector<32x128xf32>
    %24 = arith.mulf %23, %19 : vector<32x128xf32>
    %cst_11 = arith.constant 1.42141378 : f32
    %25 = vector.broadcast %cst_11 : f32 to vector<32x128xf32>
    %26 = arith.addf %24, %25 : vector<32x128xf32>
    %27 = arith.mulf %26, %19 : vector<32x128xf32>
    %cst_12 = arith.constant -0.284496725 : f32
    %28 = vector.broadcast %cst_12 : f32 to vector<32x128xf32>
    %29 = arith.addf %27, %28 : vector<32x128xf32>
    %30 = arith.mulf %29, %19 : vector<32x128xf32>
    %cst_13 = arith.constant 0.254829586 : f32
    %31 = vector.broadcast %cst_13 : f32 to vector<32x128xf32>
    %32 = arith.addf %30, %31 : vector<32x128xf32>
    %33 = arith.mulf %32, %19 : vector<32x128xf32>
    %34 = arith.mulf %10, %10 : vector<32x128xf32>
    %cst_14 = arith.constant 0.000000e+00 : f32
    %35 = vector.broadcast %cst_14 : f32 to vector<32x128xf32>
    %36 = arith.subf %35, %34 : vector<32x128xf32>
    %37 = math.exp %36 : vector<32x128xf32>
    %38 = arith.mulf %33, %37 : vector<32x128xf32>
    %cst_15 = arith.constant 1.000000e+00 : f32
    %39 = vector.broadcast %cst_15 : f32 to vector<32x128xf32>
    %40 = arith.subf %39, %38 : vector<32x128xf32>
    %41 = tpu.bitcast %9 : vector<32x128xf32> -> vector<32x128xi32>
    %c-2147483648_i32 = arith.constant -2147483648 : i32
    %42 = vector.broadcast %c-2147483648_i32 : i32 to vector<32x128xi32>
    %43 = arith.andi %41, %42 : vector<32x128xi32>
    %44 = tpu.bitcast %40 : vector<32x128xf32> -> vector<32x128xi32>
    %45 = arith.ori %44, %43 : vector<32x128xi32>
    %46 = tpu.bitcast %45 : vector<32x128xi32> -> vector<32x128xf32>
    %cst_16 = arith.constant 5.000000e-01 : f32
    %47 = vector.broadcast %cst_16 : f32 to vector<32x128xf32>
    %48 = arith.mulf %47, %7 : vector<32x128xf32>
    %49 = arith.mulf %48, %46 : vector<32x128xf32>
    %50 = arith.addf %49, %48 : vector<32x128xf32>
    %c0_17 = arith.constant 0 : index
    %c0_18 = arith.constant 0 : index
    %51 = vector.load %arg4[%c0_17, %c0_18] : memref<32x32xf32, #tpu.memory_space<vmem>>, vector<32x32xf32>
    %cst_19 = arith.constant dense<0.000000e+00> : vector<32x128xf32>
    %52 = tpu.matmul %51, %50, %cst_19 {dimension_numbers = #tpu.dot_dimension_numbers<[1], [0], [0], [1], [0, 0, 1, 1], [], []>} : vector<32x32xf32>, vector<32x128xf32>, vector<32x128xf32> -> vector<32x128xf32>
    %c0_20 = arith.constant 0 : index
    %c0_21 = arith.constant 0 : index
    %53 = vector.load %arg5[%c0_20, %c0_21] : memref<32x1xf32, #tpu.memory_space<vmem>>, vector<32x1xf32>
    %54 = vector.broadcast %53 : vector<32x1xf32> to vector<32x128xf32>
    %55 = arith.addf %52, %54 : vector<32x128xf32>
    %cst_22 = arith.constant 0.707106769 : f32
    %56 = vector.broadcast %cst_22 : f32 to vector<32x128xf32>
    %57 = arith.mulf %55, %56 : vector<32x128xf32>
    %58 = math.absf %57 : vector<32x128xf32>
    %cst_23 = arith.constant 0.327591091 : f32
    %59 = vector.broadcast %cst_23 : f32 to vector<32x128xf32>
    %60 = arith.mulf %59, %58 : vector<32x128xf32>
    %cst_24 = arith.constant 1.000000e+00 : f32
    %61 = vector.broadcast %cst_24 : f32 to vector<32x128xf32>
    %62 = arith.addf %60, %61 : vector<32x128xf32>
    %63 = tpu.reciprocal %62 {approx = true} : vector<32x128xf32> -> vector<32x128xf32>
    %64 = arith.mulf %62, %63 : vector<32x128xf32>
    %cst_25 = arith.constant 2.000000e+00 : f32
    %65 = vector.broadcast %cst_25 : f32 to vector<32x128xf32>
    %66 = arith.subf %65, %64 : vector<32x128xf32>
    %67 = arith.mulf %63, %66 : vector<32x128xf32>
    %cst_26 = arith.constant 1.06140542 : f32
    %68 = vector.broadcast %cst_26 : f32 to vector<32x128xf32>
    %69 = arith.mulf %68, %67 : vector<32x128xf32>
    %cst_27 = arith.constant -1.45315206 : f32
    %70 = vector.broadcast %cst_27 : f32 to vector<32x128xf32>
    %71 = arith.addf %69, %70 : vector<32x128xf32>
    %72 = arith.mulf %71, %67 : vector<32x128xf32>
    %cst_28 = arith.constant 1.42141378 : f32
    %73 = vector.broadcast %cst_28 : f32 to vector<32x128xf32>
    %74 = arith.addf %72, %73 : vector<32x128xf32>
    %75 = arith.mulf %74, %67 : vector<32x128xf32>
    %cst_29 = arith.constant -0.284496725 : f32
    %76 = vector.broadcast %cst_29 : f32 to vector<32x128xf32>
    %77 = arith.addf %75, %76 : vector<32x128xf32>
    %78 = arith.mulf %77, %67 : vector<32x128xf32>
    %cst_30 = arith.constant 0.254829586 : f32
    %79 = vector.broadcast %cst_30 : f32 to vector<32x128xf32>
    %80 = arith.addf %78, %79 : vector<32x128xf32>
    %81 = arith.mulf %80, %67 : vector<32x128xf32>
    %82 = arith.mulf %58, %58 : vector<32x128xf32>
    %cst_31 = arith.constant 0.000000e+00 : f32
    %83 = vector.broadcast %cst_31 : f32 to vector<32x128xf32>
    %84 = arith.subf %83, %82 : vector<32x128xf32>
    %85 = math.exp %84 : vector<32x128xf32>
    %86 = arith.mulf %81, %85 : vector<32x128xf32>
    %cst_32 = arith.constant 1.000000e+00 : f32
    %87 = vector.broadcast %cst_32 : f32 to vector<32x128xf32>
    %88 = arith.subf %87, %86 : vector<32x128xf32>
    %89 = tpu.bitcast %57 : vector<32x128xf32> -> vector<32x128xi32>
    %c-2147483648_i32_33 = arith.constant -2147483648 : i32
    %90 = vector.broadcast %c-2147483648_i32_33 : i32 to vector<32x128xi32>
    %91 = arith.andi %89, %90 : vector<32x128xi32>
    %92 = tpu.bitcast %88 : vector<32x128xf32> -> vector<32x128xi32>
    %93 = arith.ori %92, %91 : vector<32x128xi32>
    %94 = tpu.bitcast %93 : vector<32x128xi32> -> vector<32x128xf32>
    %cst_34 = arith.constant 5.000000e-01 : f32
    %95 = vector.broadcast %cst_34 : f32 to vector<32x128xf32>
    %96 = arith.mulf %95, %55 : vector<32x128xf32>
    %97 = arith.mulf %96, %94 : vector<32x128xf32>
    %98 = arith.addf %97, %96 : vector<32x128xf32>
    %c0_35 = arith.constant 0 : index
    %c0_36 = arith.constant 0 : index
    %99 = vector.load %arg6[%c0_35, %c0_36] : memref<12x32xf32, #tpu.memory_space<vmem>>, vector<12x32xf32>
    %cst_37 = arith.constant dense<0.000000e+00> : vector<12x128xf32>
    %100 = tpu.matmul %99, %98, %cst_37 {dimension_numbers = #tpu.dot_dimension_numbers<[1], [0], [0], [1], [0, 0, 1, 1], [], []>} : vector<12x32xf32>, vector<32x128xf32>, vector<12x128xf32> -> vector<12x128xf32>
    %c0_38 = arith.constant 0 : index
    %c0_39 = arith.constant 0 : index
    %101 = vector.load %arg7[%c0_38, %c0_39] : memref<12x1xf32, #tpu.memory_space<vmem>>, vector<12x1xf32>
    %102 = vector.broadcast %101 : vector<12x1xf32> to vector<12x128xf32>
    %103 = arith.addf %100, %102 : vector<12x128xf32>
    %104 = vector.extract_strided_slice %103 {offsets = [0, 0], sizes = [3, 128], strides = [1, 1]} : vector<12x128xf32> to vector<3x128xf32>
    %105 = vector.extract_strided_slice %103 {offsets = [3, 0], sizes = [3, 128], strides = [1, 1]} : vector<12x128xf32> to vector<3x128xf32>
    %106 = vector.extract_strided_slice %2 {offsets = [0, 0], sizes = [1, 128], strides = [1, 1]} : vector<3x128xf32> to vector<1x128xf32>
    %107 = vector.broadcast %106 : vector<1x128xf32> to vector<3x128xf32>
    %108 = arith.mulf %105, %107 : vector<3x128xf32>
    %109 = arith.addf %104, %108 : vector<3x128xf32>
    %110 = vector.extract_strided_slice %103 {offsets = [6, 0], sizes = [3, 128], strides = [1, 1]} : vector<12x128xf32> to vector<3x128xf32>
    %111 = vector.extract_strided_slice %2 {offsets = [1, 0], sizes = [1, 128], strides = [1, 1]} : vector<3x128xf32> to vector<1x128xf32>
    %112 = vector.broadcast %111 : vector<1x128xf32> to vector<3x128xf32>
    %113 = arith.mulf %110, %112 : vector<3x128xf32>
    %114 = arith.addf %109, %113 : vector<3x128xf32>
    %115 = vector.extract_strided_slice %103 {offsets = [9, 0], sizes = [3, 128], strides = [1, 1]} : vector<12x128xf32> to vector<3x128xf32>
    %116 = vector.extract_strided_slice %2 {offsets = [2, 0], sizes = [1, 128], strides = [1, 1]} : vector<3x128xf32> to vector<1x128xf32>
    %117 = vector.broadcast %116 : vector<1x128xf32> to vector<3x128xf32>
    %118 = arith.mulf %115, %117 : vector<3x128xf32>
    %119 = arith.addf %114, %118 : vector<3x128xf32>
    %c0_40 = arith.constant 0 : index
    %c0_41 = arith.constant 0 : index
    %120 = vector.load %arg8[%c0_40, %c0_41] : memref<3x128xf32, #tpu.memory_space<vmem>>, vector<3x128xf32>
    tpu.vector_store %arg8[%c0_40, %c0_41], %119 {strides = array<i32>} : memref<3x128xf32, #tpu.memory_space<vmem>>, vector<3x128xf32>,
    return
  }
  func.func @transform_0(%arg0: i32) -> (i32, i32) {
    %c0_i32 = arith.constant 0 : i32
    %c0_i32_0 = arith.constant 0 : i32
    return %c0_i32, %arg0 : i32, i32
  }
  func.func @transform_1(%arg0: i32) -> (i32, i32) {
    %c0_i32 = arith.constant 0 : i32
    %c0_i32_0 = arith.constant 0 : i32
    %c0_i32_1 = arith.constant 0 : i32
    return %c0_i32, %c0_i32_0 : i32, i32
  }
  func.func @transform_2(%arg0: i32) -> (i32, i32) {
    %c0_i32 = arith.constant 0 : i32
    %c0_i32_0 = arith.constant 0 : i32
    %c0_i32_1 = arith.constant 0 : i32
    return %c0_i32, %c0_i32_0 : i32, i32
  }
  func.func @transform_3(%arg0: i32) -> (i32, i32) {
    %c0_i32 = arith.constant 0 : i32
    %c0_i32_0 = arith.constant 0 : i32
    %c0_i32_1 = arith.constant 0 : i32
    return %c0_i32, %c0_i32_0 : i32, i32
  }
  func.func @transform_4(%arg0: i32) -> (i32, i32) {
    %c0_i32 = arith.constant 0 : i32
    %c0_i32_0 = arith.constant 0 : i32
    %c0_i32_1 = arith.constant 0 : i32
    return %c0_i32, %c0_i32_0 : i32, i32
  }
  func.func @transform_5(%arg0: i32) -> (i32, i32) {
    %c0_i32 = arith.constant 0 : i32
    %c0_i32_0 = arith.constant 0 : i32
    %c0_i32_1 = arith.constant 0 : i32
    return %c0_i32, %c0_i32_0 : i32, i32
  }
  func.func @transform_6(%arg0: i32) -> (i32, i32) {
    %c0_i32 = arith.constant 0 : i32
    %c0_i32_0 = arith.constant 0 : i32
    %c0_i32_1 = arith.constant 0 : i32
    return %c0_i32, %c0_i32_0 : i32, i32
  }
  func.func @transform_7(%arg0: i32) -> (i32, i32) {
    %c0_i32 = arith.constant 0 : i32
    %c0_i32_0 = arith.constant 0 : i32
    return %c0_i32, %arg0 : i32, i32
  }
}

</mosaic_0001>

<llo_original>
// kernel: cbf_forward.2
$region0: #{cbf_forward.2}
  #allocation0 [shape = 'u32[]', space=smem, size = 0x4, offset = 0x4, fixed_abs, tag = 'smem constant byte address 0x4 - core index']
  #allocation1 [shape = 'u32[144,128]{1,0:T(1,128)}', space=vmem, size = 0x12000, scoped, tag = 'internal scratch']
  #allocation2 [shape = 'u32[2048]{0}', space=vmem, size = 0x2000, scoped, tag = 'scoped memory for cbf_forward.2']
  #allocation3 [shape = 'u32[2048]{0}', space=vmem, size = 0x2000, scoped, tag = 'scoped memory for cbf_forward.2']
  #allocation4 [shape = 'u32[2048]{0}', space=vmem, size = 0x2000, scoped, tag = 'scoped memory for cbf_forward.2']
  #allocation5 [shape = 'u32[2048]{0}', space=vmem, size = 0x2000, scoped, tag = 'scoped memory for cbf_forward.2']
  #allocation6 [shape = 'u32[2048]{0}', space=vmem, size = 0x2000, scoped, tag = 'scoped memory for cbf_forward.2']
  %s0 = inlined_call_operand.vmem [shape: f32[32,3], index: 0, kind: input, shape index: {}]
  %s1 = inlined_call_operand.vmem [shape: f32[32,1], index: 1, kind: input, shape index: {}]
  %s2 = inlined_call_operand.vmem [shape: f32[32,32], index: 2, kind: input, shape index: {}]
  %s3 = inlined_call_operand.vmem [shape: f32[32,1], index: 3, kind: input, shape index: {}]
  %s4 = inlined_call_operand.vmem [shape: f32[12,32], index: 4, kind: input, shape index: {}]
  %s5 = inlined_call_operand.vmem [shape: f32[12,1], index: 5, kind: input, shape index: {}]
  %s6 = inlined_call_operand.vmem [shape: f32[6,16], index: 6, kind: input, shape index: {}]
  %s7 = inlined_call_operand.<no memory space> [shape: f32[], index: 7, kind: input, shape index: {}]
  %s8 = inlined_call_operand.vmem [shape: f32[3,128], index: 8, kind: output, shape index: {}]
  %s9 = sld [smem:[#allocation0]]
  $region38: #{cbf_forward.2} parent=0
    _
  %s11 = ssub.s32 1, %s9
  %s12 = scalar_select 0, %s11, %s9
  %v13 = vstv %s7
  $region1: #{cbf_forward.2} parent=0
    #allocation7 [shape = 'u8[4096]{0}', space=vmem, size = 0x1000, dematerialized = true, scoped, tag = 'FusionAdapter Buffer %fusion.1 = f32[6,128]{1,0:T(8,128)} fusion(%param_6.1, %param_7), kind=kLoop, calls=%fused_computation.5.clone, metadata={op_name="jit(cbf_forward)/jit(_pad)/pad" stack_frame_id=10}']
    // Predicated region
    $region2: #{cbf_forward.2} parent=1 // pred_check
      _
    $region3: #{cbf_forward.2} parent=1 // pred_check_branch
      %15 = sbr.rel (0) target = $region5
    $region4: #{cbf_forward.2} parent=1 // pred_region
      _
    $region5: #{cbf_forward.2} parent=1 // pred_fallthru
      _
    // Predicated region
    $region6: #{cbf_forward.2} parent=1 // pred_check
      _
    $region7: #{cbf_forward.2} parent=1 // pred_check_branch
      %17 = sbr.rel (0) target = $region9
    $region8: #{cbf_forward.2} parent=1 // pred_region
      _
    $region9: #{cbf_forward.2} parent=1 // pred_fallthru
      _
    // Predicated region
    $region10: #{cbf_forward.2} parent=1 // pred_check
      _
    $region11: #{cbf_forward.2} parent=1 // pred_check_branch
      %19 = sbr.rel (0) target = $region13
    $region12: #{cbf_forward.2} parent=1 // pred_region
      _
    $region13: #{cbf_forward.2} parent=1 // pred_fallthru
      _
    // Predicated region
    $region14: #{cbf_forward.2} parent=1 // pred_check
      _
    $region15: #{cbf_forward.2} parent=1 // pred_check_branch
      %21 = sbr.rel (0) target = $region17
    $region16: #{cbf_forward.2} parent=1 // pred_region
      _
    $region17: #{cbf_forward.2} parent=1 // pred_fallthru
      _
    // Predicated region
    $region18: #{cbf_forward.2} parent=1 // pred_check
      _
    $region19: #{cbf_forward.2} parent=1 // pred_check_branch
      %23 = sbr.rel (0) target = $region21
    $region20: #{cbf_forward.2} parent=1 // pred_region
      _
    $region21: #{cbf_forward.2} parent=1 // pred_fallthru
      _
    // Predicated region
    $region22: #{cbf_forward.2} parent=1 // pred_check
      _
    $region23: #{cbf_forward.2} parent=1 // pred_check_branch
      %25 = sbr.rel (0) target = $region25
    $region24: #{cbf_forward.2} parent=1 // pred_region
      _
    $region25: #{cbf_forward.2} parent=1 // pred_fallthru
      _
    // Predicated region
    $region26: #{cbf_forward.2} parent=1 // pred_check
      _
    $region27: #{cbf_forward.2} parent=1 // pred_check_branch
      %27 = sbr.rel (0) target = $region29
    $region28: #{cbf_forward.2} parent=1 // pred_region
      _
    $region29: #{cbf_forward.2} parent=1 // pred_fallthru
      _
    %v28 = vld [vmem:[%s6] sm:$0x3f]
    %v29 = vlaneseq
    %v30 = vshrl.u32 %v29, 7
    %vm32 = vcmp.lt.s32.totalorder %v30, 6
    %v33 = vsel %vm32, %v28, %v13
    %v34 = vlaneseq
    %v35 = vand.u32 %v34, 127
    %vm37 = vcmp.lt.s32.totalorder %v35, 16
    %v38 = vsel %vm37, %v33, %v13
    %40 = vst [vmem:[#allocation7] sm:$0xff] %v38
    %v41 = vld [vmem:[#allocation7] sm:$0x3f]
    %v42 = vld [vmem:[%s0] sm:$0xff]
    %v43 = vld [vmem:[%s0 + $0x8] sm:$0xff]
    %v44 = vld [vmem:[%s0 + $0x10] sm:$0xff]
    %v45 = vld [vmem:[%s0 + $0x18] sm:$0xff]
    %v46 = vld [vmem:[%s1] sm:$0xff]
    %v47 = vld [vmem:[%s1 + $0x8] sm:$0xff]
    %v48 = vld [vmem:[%s1 + $0x10] sm:$0xff]
    %v49 = vld [vmem:[%s1 + $0x18] sm:$0xff]
    %51 = vset.pattern.permute.xlu0 0
    %52 = vperm.xlu0 %51, %v46
    %v53 = vpop.permute.xlu0 %52
    %56 = vset.pattern.permute.xlu0 0
    %57 = vperm.xlu0 %56, %v47
    %v58 = vpop.permute.xlu0 %57
    %61 = vset.pattern.permute.xlu0 0
    %62 = vperm.xlu0 %61, %v48
    %v63 = vpop.permute.xlu0 %62
    %66 = vset.pattern.permute.xlu0 0
    %67 = vperm.xlu0 %66, %v49
    %v68 = vpop.permute.xlu0 %67
    %vm70 = vcmask 23552
    %v72 = vsel %vm70, %v42, 0
    %v75 = vsel %vm70, %v43, 0
    %v78 = vsel %vm70, %v44, 0
    %v81 = vsel %vm70, %v45, 0
    %vm83 = vcmask 1042432
    %v85 = vsel %vm83, %v41, 0
    %87 = vmatprep.subr.mxu0 0.0
    %88 = vmatpush1.msra.mxu0 %v85
    %89 = vmatprep.subr.mxu0 0.0
    %90 = vmatpush1.msra.mxu0 0.0
    %91 = vmatprep.subr.mxu0 0.0
    %92 = vmatpush1.msra.mxu0 0.0
    %93 = vmatprep.subr.mxu0 0.0
    %94 = vmatpush1.msra.mxu0 0.0
    %95 = vmatprep.subr.mxu0 0.0
    %96 = vmatpush1.msra.mxu0 0.0
    %97 = vmatprep.subr.mxu0 0.0
    %98 = vmatpush1.msra.mxu0 0.0
    %99 = vmatprep.subr.mxu0 0.0
    %100 = vmatpush1.msra.mxu0 0.0
    %101 = vmatprep.subr.mxu0 0.0
    %102 = vmatpush1.msra.mxu0 0.0
    %103 = vmatprep.subr.mxu0 0.0
    %104 = vmatpush1.msra.mxu0 0.0
    %105 = vmatprep.subr.mxu0 0.0
    %106 = vmatpush1.msra.mxu0 0.0
    %107 = vmatprep.subr.mxu0 0.0
    %108 = vmatpush1.msra.mxu0 0.0
    %109 = vmatprep.subr.mxu0 0.0
    %110 = vmatpush1.msra.mxu0 0.0
    %111 = vmatprep.subr.mxu0 0.0
    %112 = vmatpush1.msra.mxu0 0.0
    %113 = vmatprep.subr.mxu0 0.0
    %114 = vmatpush1.msra.mxu0 0.0
    %115 = vmatprep.subr.mxu0 0.0
    %116 = vmatpush1.msra.mxu0 0.0
    %117 = vmatprep.subr.mxu0 0.0
    %118 = vmatpush1.msra.mxu0 0.0
    %119 = vmatprep.subr.mxu0 0.0
    %120 = vmatpush1.msra.mxu0 0.0
    %121 = vmatprep.subr.mxu0 0.0
    %122 = vmatpush1.msra.mxu0 0.0
    %123 = vmatprep.subr.mxu0 0.0
    %124 = vmatpush1.msra.mxu0 0.0
    %125 = vmatprep.subr.mxu0 0.0
    %126 = vmatpush1.msra.mxu0 0.0
    %127 = vmatprep.subr.mxu0 0.0
    %128 = vmatpush1.msra.mxu0 0.0
    %129 = vmatprep.subr.mxu0 0.0
    %130 = vmatpush1.msra.mxu0 0.0
    %131 = vmatprep.subr.mxu0 0.0
    %132 = vmatpush1.msra.mxu0 0.0
    %133 = vmatprep.subr.mxu0 0.0
    %134 = vmatpush1.msra.mxu0 0.0
    %135 = vmatprep.subr.mxu0 0.0
    %136 = vmatpush1.msra.mxu0 0.0
    %137 = vmatprep.subr.mxu0 0.0
    %138 = vmatpush1.msra.mxu0 0.0
    %139 = vmatprep.subr.mxu0 0.0
    %140 = vmatpush1.msra.mxu0 0.0
    %141 = vmatprep.subr.mxu0 0.0
    %142 = vmatpush1.msra.mxu0 0.0
    %143 = vmatprep.subr.mxu0 0.0
    %144 = vmatpush1.msra.mxu0 0.0
    %145 = vmatprep.subr.mxu0 0.0
    %146 = vmatpush1.msra.mxu0 0.0
    %147 = vmatprep.subr.mxu0 0.0
    %148 = vmatpush1.msra.mxu0 0.0
    %149 = vmatprep.subr.mxu0 0.0
    %150 = vmatpush1.msra.mxu0 0.0
    %151 = vmatprep.mubr.f32.mxu0 0.0
    %152 = vmatmul.mubr.f32.gmra.mrb[0].mxu0 %v72
    %v153 = vpop.f32.mrb[0].mxu0
    %v154 = vadd.f32 %v53, %v153
    %v155 = vpop.f32.mrb[0].mxu0
    %156 = vmatprep.mubr.f32.mxu0 0.0
    %157 = vmatmul.mubr.f32.gmra.mrb[0].mxu0 %v75
    %v158 = vpop.f32.mrb[0].mxu0
    %v159 = vadd.f32 %v58, %v158
    %v160 = vpop.f32.mrb[0].mxu0
    %161 = vmatprep.mubr.f32.mxu0 0.0
    %162 = vmatmul.mubr.f32.gmra.mrb[0].mxu0 %v78
    %v163 = vpop.f32.mrb[0].mxu0
    %v164 = vadd.f32 %v63, %v163
    %v165 = vpop.f32.mrb[0].mxu0
    %166 = vmatprep.mubr.f32.mxu0 0.0
    %167 = vmatmul.mubr.f32.gmra.mrb[0].mxu0 %v81
    %v168 = vpop.f32.mrb[0].mxu0
    %v169 = vadd.f32 %v68, %v168
    %v170 = vpop.f32.mrb[0].mxu0
    %171 = vdwg.mxu0
    %v172 = vmul.f32 %v154, 0.70710677
    %v173 = vmul.f32 %v159, 0.70710677
    %v174 = vmul.f32 %v164, 0.70710677
    %v175 = vmul.f32 %v169, 0.70710677
    %v176 = vand.u32 2147483647, %v172
    %v177 = vand.u32 2147483647, %v173
    %v178 = vand.u32 2147483647, %v174
    %v179 = vand.u32 2147483647, %v175
    %v180 = vmul.f32 %v176, 0.3275911
    %v181 = vmul.f32 %v177, 0.3275911
    %v182 = vmul.f32 %v178, 0.3275911
    %v183 = vmul.f32 %v179, 0.3275911
    %v184 = vadd.f32 %v180, 1.0
    %v185 = vadd.f32 %v181, 1.0
    %v186 = vadd.f32 %v182, 1.0
    %v187 = vadd.f32 %v183, 1.0
    %v188 = vrcp.pop %v184
    %v189 = vrcp.pop %v185
    %v190 = vrcp.pop %v186
    %v191 = vrcp.pop %v187
    %v192 = vmul.f32 %v184, %v188
    %v193 = vmul.f32 %v185, %v189
    %v194 = vmul.f32 %v186, %v190
    %v195 = vmul.f32 %v187, %v191
    %v196 = vsub.f32 2.0, %v192
    %v197 = vsub.f32 2.0, %v193
    %v198 = vsub.f32 2.0, %v194
    %v199 = vsub.f32 2.0, %v195
    %v200 = vmul.f32 %v188, %v196
    %v201 = vmul.f32 %v189, %v197
    %v202 = vmul.f32 %v190, %v198
    %v203 = vmul.f32 %v191, %v199
    %v204 = vmul.f32 %v200, 1.0614054
    %v205 = vmul.f32 %v201, 1.0614054
    %v206 = vmul.f32 %v202, 1.0614054
    %v207 = vmul.f32 %v203, 1.0614054
    %v208 = vadd.f32 %v204, -1.4531521
    %v209 = vadd.f32 %v205, -1.4531521
    %v210 = vadd.f32 %v206, -1.4531521
    %v211 = vadd.f32 %v207, -1.4531521
    %v212 = vmul.f32 %v208, %v200
    %v213 = vmul.f32 %v209, %v201
    %v214 = vmul.f32 %v210, %v202
    %v215 = vmul.f32 %v211, %v203
    %v216 = vadd.f32 %v212, 1.4214138
    %v217 = vadd.f32 %v213, 1.4214138
    %v218 = vadd.f32 %v214, 1.4214138
    %v219 = vadd.f32 %v215, 1.4214138
    %v220 = vmul.f32 %v216, %v200
    %v221 = vmul.f32 %v217, %v201
    %v222 = vmul.f32 %v218, %v202
    %v223 = vmul.f32 %v219, %v203
    %v224 = vadd.f32 %v220, -0.28449672
    %v225 = vadd.f32 %v221, -0.28449672
    %v226 = vadd.f32 %v222, -0.28449672
    %v227 = vadd.f32 %v223, -0.28449672
    %v228 = vmul.f32 %v224, %v200
    %v229 = vmul.f32 %v225, %v201
    %v230 = vmul.f32 %v226, %v202
    %v231 = vmul.f32 %v227, %v203
    %v232 = vadd.f32 %v228, 0.2548296
    %v233 = vadd.f32 %v229, 0.2548296
    %v234 = vadd.f32 %v230, 0.2548296
    %v235 = vadd.f32 %v231, 0.2548296
    %v236 = vmul.f32 %v232, %v200
    %v237 = vmul.f32 %v233, %v201
    %v238 = vmul.f32 %v234, %v202
    %v239 = vmul.f32 %v235, %v203
    %v240 = vmul.f32 %v176, %v176
    %v241 = vmul.f32 %v177, %v177
    %v242 = vmul.f32 %v178, %v178
    %v243 = vmul.f32 %v179, %v179
    %v244 = vsub.f32 0.0, %v240
    %v245 = vsub.f32 0.0, %v241
    %v246 = vsub.f32 0.0, %v242
    %v247 = vsub.f32 0.0, %v243
    %v248 = vmul.f32 %v244, 1.442695
    %v249 = vpow.pop %v248
    %v250 = vmul.f32 %v245, 1.442695
    %v251 = vpow.pop %v250
    %v252 = vmul.f32 %v246, 1.442695
    %v253 = vpow.pop %v252
    %v254 = vmul.f32 %v247, 1.442695
    %v255 = vpow.pop %v254
    %v256 = vmul.f32 %v236, %v249
    %v257 = vmul.f32 %v237, %v251
    %v258 = vmul.f32 %v238, %v253
    %v259 = vmul.f32 %v239, %v255
    %v260 = vsub.f32 1.0, %v256
    %v261 = vsub.f32 1.0, %v257
    %v262 = vsub.f32 1.0, %v258
    %v263 = vsub.f32 1.0, %v259
    %v268 = vand.u32 %v172, 2147483648
    %v269 = vand.u32 %v173, 2147483648
    %v270 = vand.u32 %v174, 2147483648
    %v271 = vand.u32 %v175, 2147483648
    %v276 = vor.u32 %v260, %v268
    %v277 = vor.u32 %v261, %v269
    %v278 = vor.u32 %v262, %v270
    %v279 = vor.u32 %v263, %v271
    %v284 = vmul.f32 %v154, 0.5
    %v285 = vmul.f32 %v159, 0.5
    %v286 = vmul.f32 %v164, 0.5
    %v287 = vmul.f32 %v169, 0.5
    %v288 = vmul.f32 %v284, %v276
    %v289 = vmul.f32 %v285, %v277
    %v290 = vmul.f32 %v286, %v278
    %v291 = vmul.f32 %v287, %v279
    %v292 = vadd.f32 %v288, %v284
    %v293 = vadd.f32 %v289, %v285
    %v294 = vadd.f32 %v290, %v286
    %v295 = vadd.f32 %v291, %v287
    %v296 = vld [vmem:[%s2] sm:$0xff]
    %v297 = vld [vmem:[%s2 + $0x8] sm:$0xff]
    %v298 = vld [vmem:[%s2 + $0x10] sm:$0xff]
    %v299 = vld [vmem:[%s2 + $0x18] sm:$0xff]
    %v300 = vld [vmem:[%s3] sm:$0xff]
    %v301 = vld [vmem:[%s3 + $0x8] sm:$0xff]
    %v302 = vld [vmem:[%s3 + $0x10] sm:$0xff]
    %v303 = vld [vmem:[%s3 + $0x18] sm:$0xff]
    %305 = vset.pattern.permute.xlu0 0
    %306 = vperm.xlu0 %305, %v300
    %v307 = vpop.permute.xlu0 %306
    %310 = vset.pattern.permute.xlu0 0
    %311 = vperm.xlu0 %310, %v301
    %v312 = vpop.permute.xlu0 %311
    %315 = vset.pattern.permute.xlu0 0
    %316 = vperm.xlu0 %315, %v302
    %v317 = vpop.permute.xlu0 %316
    %320 = vset.pattern.permute.xlu0 0
    %321 = vperm.xlu0 %320, %v303
    %v322 = vpop.permute.xlu0 %321
    %vm324 = vcmask 261120
    %v326 = vsel %vm324, %v296, 0
    %v329 = vsel %vm324, %v297, 0
    %v332 = vsel %vm324, %v298, 0
    %v335 = vsel %vm324, %v299, 0
    %337 = vmatprep.subr.mxu0 0.0
    %338 = vmatpush1.msra.mxu0 %v292
    %339 = vmatprep.subr.mxu0 0.0
    %340 = vmatpush1.msra.mxu0 %v293
    %341 = vmatprep.subr.mxu0 0.0
    %342 = vmatpush1.msra.mxu0 %v294
    %343 = vmatprep.subr.mxu0 0.0
    %344 = vmatpush1.msra.mxu0 %v295
    %345 = vmatprep.subr.mxu0 0.0
    %346 = vmatpush1.msra.mxu0 0.0
    %347 = vmatprep.subr.mxu0 0.0
    %348 = vmatpush1.msra.mxu0 0.0
    %349 = vmatprep.subr.mxu0 0.0
    %350 = vmatpush1.msra.mxu0 0.0
    %351 = vmatprep.subr.mxu0 0.0
    %352 = vmatpush1.msra.mxu0 0.0
    %353 = vmatprep.subr.mxu0 0.0
    %354 = vmatpush1.msra.mxu0 0.0
    %355 = vmatprep.subr.mxu0 0.0
    %356 = vmatpush1.msra.mxu0 0.0
    %357 = vmatprep.subr.mxu0 0.0
    %358 = vmatpush1.msra.mxu0 0.0
    %359 = vmatprep.subr.mxu0 0.0
    %360 = vmatpush1.msra.mxu0 0.0
    %361 = vmatprep.subr.mxu0 0.0
    %362 = vmatpush1.msra.mxu0 0.0
    %363 = vmatprep.subr.mxu0 0.0
    %364 = vmatpush1.msra.mxu0 0.0
    %365 = vmatprep.subr.mxu0 0.0
    %366 = vmatpush1.msra.mxu0 0.0
    %367 = vmatprep.subr.mxu0 0.0
    %368 = vmatpush1.msra.mxu0 0.0
    %369 = vmatprep.subr.mxu0 0.0
    %370 = vmatpush1.msra.mxu0 0.0
    %371 = vmatprep.subr.mxu0 0.0
    %372 = vmatpush1.msra.mxu0 0.0
    %373 = vmatprep.subr.mxu0 0.0
    %374 = vmatpush1.msra.mxu0 0.0
    %375 = vmatprep.subr.mxu0 0.0
    %376 = vmatpush1.msra.mxu0 0.0
    %377 = vmatprep.subr.mxu0 0.0
    %378 = vmatpush1.msra.mxu0 0.0
    %379 = vmatprep.subr.mxu0 0.0
    %380 = vmatpush1.msra.mxu0 0.0
    %381 = vmatprep.subr.mxu0 0.0
    %382 = vmatpush1.msra.mxu0 0.0
    %383 = vmatprep.subr.mxu0 0.0
    %384 = vmatpush1.msra.mxu0 0.0
    %385 = vmatprep.subr.mxu0 0.0
    %386 = vmatpush1.msra.mxu0 0.0
    %387 = vmatprep.subr.mxu0 0.0
    %388 = vmatpush1.msra.mxu0 0.0
    %389 = vmatprep.subr.mxu0 0.0
    %390 = vmatpush1.msra.mxu0 0.0
    %391 = vmatprep.subr.mxu0 0.0
    %392 = vmatpush1.msra.mxu0 0.0
    %393 = vmatprep.subr.mxu0 0.0
    %394 = vmatpush1.msra.mxu0 0.0
    %395 = vmatprep.subr.mxu0 0.0
    %396 = vmatpush1.msra.mxu0 0.0
    %397 = vmatprep.subr.mxu0 0.0
    %398 = vmatpush1.msra.mxu0 0.0
    %399 = vmatprep.subr.mxu0 0.0
    %400 = vmatpush1.msra.mxu0 0.0
    %401 = vmatprep.mubr.f32.mxu0 0.0
    %402 = vmatmul.mubr.f32.gmra.mrb[0].mxu0 %v326
    %v403 = vpop.f32.mrb[0].mxu0
    %v404 = vadd.f32 %v307, %v403
    %v405 = vpop.f32.mrb[0].mxu0
    %406 = vmatprep.mubr.f32.mxu0 0.0
    %407 = vmatmul.mubr.f32.gmra.mrb[0].mxu0 %v329
    %v408 = vpop.f32.mrb[0].mxu0
    %v409 = vadd.f32 %v312, %v408
    %v410 = vpop.f32.mrb[0].mxu0
    %411 = vmatprep.mubr.f32.mxu0 0.0
    %412 = vmatmul.mubr.f32.gmra.mrb[0].mxu0 %v332
    %v413 = vpop.f32.mrb[0].mxu0
    %v414 = vadd.f32 %v317, %v413
    %v415 = vpop.f32.mrb[0].mxu0
    %416 = vmatprep.mubr.f32.mxu0 0.0
    %417 = vmatmul.mubr.f32.gmra.mrb[0].mxu0 %v335
    %v418 = vpop.f32.mrb[0].mxu0
    %v419 = vadd.f32 %v322, %v418
    %v420 = vpop.f32.mrb[0].mxu0
    %421 = vdwg.mxu0
    %v422 = vmul.f32 %v404, 0.70710677
    %v423 = vmul.f32 %v409, 0.70710677
    %v424 = vmul.f32 %v414, 0.70710677
    %v425 = vmul.f32 %v419, 0.70710677
    %v426 = vand.u32 2147483647, %v422
    %v427 = vand.u32 2147483647, %v423
    %v428 = vand.u32 2147483647, %v424
    %v429 = vand.u32 2147483647, %v425
    %v430 = vmul.f32 %v426, 0.3275911
    %v431 = vmul.f32 %v427, 0.3275911
    %v432 = vmul.f32 %v428, 0.3275911
    %v433 = vmul.f32 %v429, 0.3275911
    %v434 = vadd.f32 %v430, 1.0
    %v435 = vadd.f32 %v431, 1.0
    %v436 = vadd.f32 %v432, 1.0
    %v437 = vadd.f32 %v433, 1.0
    %v438 = vrcp.pop %v434
    %v439 = vrcp.pop %v435
    %v440 = vrcp.pop %v436
    %v441 = vrcp.pop %v437
    %v442 = vmul.f32 %v434, %v438
    %v443 = vmul.f32 %v435, %v439
    %v444 = vmul.f32 %v436, %v440
    %v445 = vmul.f32 %v437, %v441
    %v446 = vsub.f32 2.0, %v442
    %v447 = vsub.f32 2.0, %v443
    %v448 = vsub.f32 2.0, %v444
    %v449 = vsub.f32 2.0, %v445
    %v450 = vmul.f32 %v438, %v446
    %v451 = vmul.f32 %v439, %v447
    %v452 = vmul.f32 %v440, %v448
    %v453 = vmul.f32 %v441, %v449
    %v454 = vmul.f32 %v450, 1.0614054
    %v455 = vmul.f32 %v451, 1.0614054
    %v456 = vmul.f32 %v452, 1.0614054
    %v457 = vmul.f32 %v453, 1.0614054
    %v458 = vadd.f32 %v454, -1.4531521
    %v459 = vadd.f32 %v455, -1.4531521
    %v460 = vadd.f32 %v456, -1.4531521
    %v461 = vadd.f32 %v457, -1.4531521
    %v462 = vmul.f32 %v458, %v450
    %v463 = vmul.f32 %v459, %v451
    %v464 = vmul.f32 %v460, %v452
    %v465 = vmul.f32 %v461, %v453
    %v466 = vadd.f32 %v462, 1.4214138
    %v467 = vadd.f32 %v463, 1.4214138
    %v468 = vadd.f32 %v464, 1.4214138
    %v469 = vadd.f32 %v465, 1.4214138
    %v470 = vmul.f32 %v466, %v450
    %v471 = vmul.f32 %v467, %v451
    %v472 = vmul.f32 %v468, %v452
    %v473 = vmul.f32 %v469, %v453
    %v474 = vadd.f32 %v470, -0.28449672
    %v475 = vadd.f32 %v471, -0.28449672
    %v476 = vadd.f32 %v472, -0.28449672
    %v477 = vadd.f32 %v473, -0.28449672
    %v478 = vmul.f32 %v474, %v450
    %v479 = vmul.f32 %v475, %v451
    %v480 = vmul.f32 %v476, %v452
    %v481 = vmul.f32 %v477, %v453
    %v482 = vadd.f32 %v478, 0.2548296
    %v483 = vadd.f32 %v479, 0.2548296
    %v484 = vadd.f32 %v480, 0.2548296
    %v485 = vadd.f32 %v481, 0.2548296
    %v486 = vmul.f32 %v482, %v450
    %v487 = vmul.f32 %v483, %v451
    %v488 = vmul.f32 %v484, %v452
    %v489 = vmul.f32 %v485, %v453
    %v490 = vmul.f32 %v426, %v426
    %v491 = vmul.f32 %v427, %v427
    %v492 = vmul.f32 %v428, %v428
    %v493 = vmul.f32 %v429, %v429
    %v494 = vsub.f32 0.0, %v490
    %v495 = vsub.f32 0.0, %v491
    %v496 = vsub.f32 0.0, %v492
    %v497 = vsub.f32 0.0, %v493
    %v498 = vmul.f32 %v494, 1.442695
    %v499 = vpow.pop %v498
    %v500 = vmul.f32 %v495, 1.442695
    %v501 = vpow.pop %v500
    %v502 = vmul.f32 %v496, 1.442695
    %v503 = vpow.pop %v502
    %v504 = vmul.f32 %v497, 1.442695
    %v505 = vpow.pop %v504
    %v506 = vmul.f32 %v486, %v499
    %v507 = vmul.f32 %v487, %v501
    %v508 = vmul.f32 %v488, %v503
    %v509 = vmul.f32 %v489, %v505
    %v510 = vsub.f32 1.0, %v506
    %v511 = vsub.f32 1.0, %v507
    %v512 = vsub.f32 1.0, %v508
    %v513 = vsub.f32 1.0, %v509
    %v518 = vand.u32 %v422, 2147483648
    %v519 = vand.u32 %v423, 2147483648
    %v520 = vand.u32 %v424, 2147483648
    %v521 = vand.u32 %v425, 2147483648
    %v526 = vor.u32 %v510, %v518
    %v527 = vor.u32 %v511, %v519
    %v528 = vor.u32 %v512, %v520
    %v529 = vor.u32 %v513, %v521
    %v534 = vmul.f32 %v404, 0.5
    %v535 = vmul.f32 %v409, 0.5
    %v536 = vmul.f32 %v414, 0.5
    %v537 = vmul.f32 %v419, 0.5
    %v538 = vmul.f32 %v534, %v526
    %v539 = vmul.f32 %v535, %v527
    %v540 = vmul.f32 %v536, %v528
    %v541 = vmul.f32 %v537, %v529
    %v542 = vadd.f32 %v538, %v534
    %v543 = vadd.f32 %v539, %v535
    %v544 = vadd.f32 %v540, %v536
    %v545 = vadd.f32 %v541, %v537
    %v546 = vld [vmem:[%s4] sm:$0xff]
    %v547 = vld [vmem:[%s4 + $0x8] sm:$0xf]
    %v548 = vld [vmem:[%s5] sm:$0xff]
    %v549 = vld [vmem:[%s5 + $0x8] sm:$0xf]
    %551 = vset.pattern.permute.xlu0 0
    %552 = vperm.xlu0 %551, %v548
    %v553 = vpop.permute.xlu0 %552
    %556 = vset.pattern.permute.xlu0 0
    %557 = vperm.xlu0 %556, %v549
    %v558 = vpop.permute.xlu0 %557
    %v561 = vsel %vm324, %v546, 0
    %v564 = vsel %vm324, %v547, 0
    %566 = vmatprep.subr.mxu0 0.0
    %567 = vmatpush1.msra.mxu0 %v542
    %568 = vmatprep.subr.mxu0 0.0
    %569 = vmatpush1.msra.mxu0 %v543
    %570 = vmatprep.subr.mxu0 0.0
    %571 = vmatpush1.msra.mxu0 %v544
    %572 = vmatprep.subr.mxu0 0.0
    %573 = vmatpush1.msra.mxu0 %v545
    %574 = vmatprep.subr.mxu0 0.0
    %575 = vmatpush1.msra.mxu0 0.0
    %576 = vmatprep.subr.mxu0 0.0
    %577 = vmatpush1.msra.mxu0 0.0
    %578 = vmatprep.subr.mxu0 0.0
    %579 = vmatpush1.msra.mxu0 0.0
    %580 = vmatprep.subr.mxu0 0.0
    %581 = vmatpush1.msra.mxu0 0.0
    %582 = vmatprep.subr.mxu0 0.0
    %583 = vmatpush1.msra.mxu0 0.0
    %584 = vmatprep.subr.mxu0 0.0
    %585 = vmatpush1.msra.mxu0 0.0
    %586 = vmatprep.subr.mxu0 0.0
    %587 = vmatpush1.msra.mxu0 0.0
    %588 = vmatprep.subr.mxu0 0.0
    %589 = vmatpush1.msra.mxu0 0.0
    %590 = vmatprep.subr.mxu0 0.0
    %591 = vmatpush1.msra.mxu0 0.0
    %592 = vmatprep.subr.mxu0 0.0
    %593 = vmatpush1.msra.mxu0 0.0
    %594 = vmatprep.subr.mxu0 0.0
    %595 = vmatpush1.msra.mxu0 0.0
    %596 = vmatprep.subr.mxu0 0.0
    %597 = vmatpush1.msra.mxu0 0.0
    %598 = vmatprep.subr.mxu0 0.0
    %599 = vmatpush1.msra.mxu0 0.0
    %600 = vmatprep.subr.mxu0 0.0
    %601 = vmatpush1.msra.mxu0 0.0
    %602 = vmatprep.subr.mxu0 0.0
    %603 = vmatpush1.msra.mxu0 0.0
    %604 = vmatprep.subr.mxu0 0.0
    %605 = vmatpush1.msra.mxu0 0.0
    %606 = vmatprep.subr.mxu0 0.0
    %607 = vmatpush1.msra.mxu0 0.0
    %608 = vmatprep.subr.mxu0 0.0
    %609 = vmatpush1.msra.mxu0 0.0
    %610 = vmatprep.subr.mxu0 0.0
    %611 = vmatpush1.msra.mxu0 0.0
    %612 = vmatprep.subr.mxu0 0.0
    %613 = vmatpush1.msra.mxu0 0.0
    %614 = vmatprep.subr.mxu0 0.0
    %615 = vmatpush1.msra.mxu0 0.0
    %616 = vmatprep.subr.mxu0 0.0
    %617 = vmatpush1.msra.mxu0 0.0
    %618 = vmatprep.subr.mxu0 0.0
    %619 = vmatpush1.msra.mxu0 0.0
    %620 = vmatprep.subr.mxu0 0.0
    %621 = vmatpush1.msra.mxu0 0.0
    %622 = vmatprep.subr.mxu0 0.0
    %623 = vmatpush1.msra.mxu0 0.0
    %624 = vmatprep.subr.mxu0 0.0
    %625 = vmatpush1.msra.mxu0 0.0
    %626 = vmatprep.subr.mxu0 0.0
    %627 = vmatpush1.msra.mxu0 0.0
    %628 = vmatprep.subr.mxu0 0.0
    %629 = vmatpush1.msra.mxu0 0.0
    %630 = vmatprep.mubr.f32.mxu0 0.0
    %631 = vmatmul.mubr.f32.gmra.mrb[0].mxu0 %v561
    %v632 = vpop.f32.mrb[0].mxu0
    %v633 = vadd.f32 %v553, %v632
    %v634 = vpop.f32.mrb[0].mxu0
    %635 = vmatprep.mubr.f32.mxu0 0.0
    %636 = vmatmul.mubr.f32.gmra.mrb[0].mxu0 %v564
    %v637 = vpop.f32.mrb[0].mxu0
    %v638 = vadd.f32 %v558, %v637
    %v639 = vpop.f32.mrb[0].mxu0
    %640 = vdwg.mxu0
    %v641 = vlaneseq
    %v642 = vshrl.u32 %v641, 7
    %v643 = vsub.s32 3, %v642
    %v644 = vrot.slane %v41, %v643
    %v645 = vmul.f32 %v633, %v644
    %v647 = vrot.slane %v645, 3
    %v649 = vadd.f32 %v633, %v647
    %v650 = vlaneseq
    %v651 = vshrl.u32 %v650, 7
    %v652 = vsub.s32 4, %v651
    %v653 = vrot.slane %v41, %v652
    %v654 = vmul.f32 %v633, %v653
    %v655 = vmul.f32 %v638, %v653
    %vm658 = vcmask 1041408
    %v659 = vrot.slane %v654, 6
    %v660 = vrot.slane %v655, 6
    %v661 = vsel %vm658, %v659, %v660
    %v663 = vadd.f32 %v649, %v661
    %v664 = vlaneseq
    %v665 = vshrl.u32 %v664, 7
    %v666 = vsub.s32 5, %v665
    %v667 = vrot.slane %v41, %v666
    %v668 = vmul.f32 %v638, %v667
    %v670 = vrot.slane %v668, 1
    %v672 = vadd.f32 %v663, %v670
    %673 = vst [vmem:[%s8] sm:$0x7] %v672
    // Predicated region
    $region30: #{cbf_forward.2} parent=1 // pred_check
      _
    $region31: #{cbf_forward.2} parent=1 // pred_check_branch
      %675 = sbr.rel (0) target = $region33
    $region32: #{cbf_forward.2} parent=1 // pred_region
      _
    $region33: #{cbf_forward.2} parent=1 // pred_fallthru
      _
    // Predicated region
    $region34: #{cbf_forward.2} parent=1 // pred_check
      _
    $region35: #{cbf_forward.2} parent=1 // pred_check_branch
      %677 = sbr.rel (0) target = $region37
    $region36: #{cbf_forward.2} parent=1 // pred_region
      _
    $region37: #{cbf_forward.2} parent=1 // pred_fallthru
      _

</llo_original>
